<compile_context>
chip_gen: v7x
topology: tpu7x:2x2x1
jax: 0.10.0
libtpu: 0.0.40
codegen_flags: <defaults>
</compile_context>

<pallas_src>
import functools

import jax
import jax.numpy as jnp
from jax.experimental import pallas as pl
from jax.experimental.pallas import tpu as pltpu

BN_EPS = 1e-5
LANE = 128


def _round_up(x, m):
    return (x + m - 1) // m * m


def _pick_rows_per_tile(Ho, Wo, Cpad, *, acc_budget_bytes=2 << 20, prefer_tiles=1):
    """Rows of output per grid step: largest divisor of Ho whose tile is lane-dense
    (th*Wo % 128 == 0) and whose f32 accumulator fits the budget.  Falls back to the
    whole image (block last dim == M is always a legal BlockSpec)."""
    divs = [d for d in range(1, Ho + 1) if Ho % d == 0]
    ok = [d for d in divs
          if (d * Wo) % LANE == 0 and d * Wo * Cpad * 4 <= acc_budget_bytes]
    if ok:
        pref = [d for d in ok if Ho // d >= prefer_tiles]
        return max(pref) if pref else max(ok)
    return Ho


# ----------------- shared: halo'd row strip -> folded im2col patch -----------------

def _make_patch(x_ref, t, *, KH, KW, dilation, th, Wo, matmul_dtype):
    """x_ref: (1, Hp, Wp, Cin) block (full padded image).  Returns the
    (th*Wo, KH*KW*Cin) patch for output-row strip t, cast to the MXU operand dtype.

    Only the strip rows [t*th, t*th + th + dilation*(KH-1)) are loaded from the ref;
    the KH*KW shifted taps are lane-concatenated so the whole tap loop collapses into
    a single MXU contraction (K = KH*KW*Cin instead of K = Cin)."""
    Cin = x_ref.shape[-1]
    strip_h = th + dilation * (KH - 1)
    row0 = pl.multiple_of(t * th, th)
    xs = x_ref[0, pl.ds(row0, strip_h), :, :]            # (strip_h, Wp, Cin), f32
    taps = []
    for kh in range(KH):
        for kw in range(KW):
            hk = kh * dilation
            wk = kw * dilation
            taps.append(xs[hk:hk + th, wk:wk + Wo, :])   # (th, Wo, Cin)
    patch = jnp.concatenate(taps, axis=-1)               # (th, Wo, KH*KW*Cin)
    return patch.reshape(th * Wo, KH * KW * Cin).astype(matmul_dtype)


# ----------------- Pass 1: per-(image, strip) BN partial statistics (stats only) ----

def _conv_stats_kernel(x_ref, w_ref, sum_ref, sq_ref, *,
                       KH, KW, dilation, th, Wo, matmul_dtype):
    """x_ref: (1, Hp, Wp, Cin)   w_ref: (KH*KW*Cin, Cpad)
    sum_ref / sq_ref: (1, 1, 1, Cpad) f32 partial channel sums for this (n, strip)."""
    t = pl.program_id(1)
    patch = _make_patch(x_ref, t, KH=KH, KW=KW, dilation=dilation, th=th, Wo=Wo,
                        matmul_dtype=matmul_dtype)
    acc = jnp.dot(patch, w_ref[...], preferred_element_type=jnp.float32)  # (tile_m, Cpad)
    cpad = acc.shape[-1]
    sum_ref[...] = jnp.sum(acc, axis=0).reshape(1, 1, 1, cpad)
    sq_ref[...] = jnp.sum(acc * acc, axis=0).reshape(1, 1, 1, cpad)


# ----------------- Pass 2: conv recompute + BN + ReLU + NCHW layout (fused) ---------

def _conv_bn_relu_kernel(x_ref, w_ref, scale_ref, shift_ref, o_ref, *,
                         KH, KW, dilation, th, Wo, Cout, matmul_dtype):
    """o_ref: (1, Cout, tile_m) — already the final (N, Cout, Ho*Wo) layout, so the
    wrapper only needs a free reshape (no un-pad / transpose HBM pass)."""
    t = pl.program_id(1)
    patch = _make_patch(x_ref, t, KH=KH, KW=KW, dilation=dilation, th=th, Wo=Wo,
                        matmul_dtype=matmul_dtype)
    acc = jnp.dot(patch, w_ref[...], preferred_element_type=jnp.float32)  # (tile_m, Cpad)
    y = jnp.maximum(acc * scale_ref[...] + shift_ref[...], 0.0)           # f32 epilogue
    yt = y.T                                                              # (Cpad, tile_m) XLU transpose
    o_ref[...] = yt[:Cout, :].astype(o_ref.dtype)[None]


# ----------------- Wrapper -----------------

def conv_bn_relu_forward(x_nchw, weight_oihw, gamma, beta, *,
                         stride=1, padding=0, dilation=1,
                         matmul_dtype=jnp.float32, rows_per_tile=None):
    """Matches conv_bn_relu.forward(x) for a freshly-constructed module (training mode)."""
    # TODO(synk): stride > 1 would need strided tap slices in _make_patch; only stride=1.
    assert stride == 1, "only stride=1 implemented"

    N, Cin, H, W = x_nchw.shape
    Cout, Cin_w, KH, KW = weight_oihw.shape
    assert Cin_w == Cin
    Ho = (H + 2 * padding - dilation * (KH - 1) - 1) // stride + 1
    Wo = (W + 2 * padding - dilation * (KW - 1) - 1) // stride + 1
    Hp, Wp = H + 2 * padding, W + 2 * padding
    M = Ho * Wo
    K = KH * KW * Cin
    Cpad = _round_up(Cout, LANE)   # MXU N-dim / VMEM-resident operands only (never HBM)

    if rows_per_tile is None:
        rows_per_tile = _pick_rows_per_tile(Ho, Wo, Cpad,
                                            prefer_tiles=2 if N == 1 else 1)
    th = rows_per_tile
    assert Ho % th == 0, (Ho, th)
    tile_m = th * Wo
    assert tile_m % LANE == 0 or tile_m == M, tile_m
    T = Ho // th

    # ---- One fused XLA pass over the (small) input: NCHW -> NHWC + spatial zero-pad.
    # Kept in f32 in HBM; the bf16 MXU-operand cast (if any) happens on the in-kernel
    # patch so no extra full-tensor cast pass is needed.
    # TODO(synk): boundary taps could be masked in-kernel to drop this pad entirely.
    xp = jnp.pad(jnp.transpose(x_nchw, (0, 2, 3, 1)).astype(jnp.float32),
                 ((0, 0), (padding, padding), (padding, padding), (0, 0)))

    # ---- Weights: OIHW -> (KH*KW*Cin, Cpad), tap-major contracting dim, zero-padded
    # output channels (tiny, VMEM-resident for both passes).
    w_flat = jnp.transpose(weight_oihw.astype(jnp.float32), (2, 3, 1, 0)).reshape(K, Cout)
    w_flat = jnp.pad(w_flat, ((0, 0), (0, Cpad - Cout))).astype(matmul_dtype)

    kern_kw = dict(KH=KH, KW=KW, dilation=dilation, th=th, Wo=Wo,
                   matmul_dtype=matmul_dtype)

    # ---- Pass 1: BN partial statistics only (no conv slab written to HBM).
    # x block index depends only on n, so it stays VMEM-resident across the T strips.
    sums, sqs = pl.pallas_call(
        functools.partial(_conv_stats_kernel, **kern_kw),
        grid=(N, T),
        in_specs=[
            pl.BlockSpec((1, Hp, Wp, Cin), lambda n, t: (n, 0, 0, 0)),
            pl.BlockSpec((K, Cpad), lambda n, t: (0, 0)),
        ],
        out_specs=(
            pl.BlockSpec((1, 1, 1, Cpad), lambda n, t: (n, t, 0, 0)),
            pl.BlockSpec((1, 1, 1, Cpad), lambda n, t: (n, t, 0, 0)),
        ),
        out_shape=(
            jax.ShapeDtypeStruct((N, T, 1, Cpad), jnp.float32),
            jax.ShapeDtypeStruct((N, T, 1, Cpad), jnp.float32),
        ),
        compiler_params=pltpu.CompilerParams(
            dimension_semantics=("parallel", "parallel")),
    )(xp, w_flat)

    # ---- Tiny XLA glue (O(Cpad) work): batch stats -> per-channel scale / shift.
    count = N * M
    mean = sums.sum(axis=(0, 1, 2)) / count
    # TODO(synk): E[x^2]-E[x]^2 in f32 can cancel for strongly non-zero-mean activations;
    # a Welford-style in-kernel carry would fix it without a third pass over x.
    var = jnp.maximum(sqs.sum(axis=(0, 1, 2)) / count - mean * mean, 0.0)
    inv = jax.lax.rsqrt(var + BN_EPS)
    gamma_p = jnp.pad(gamma.astype(jnp.float32), (0, Cpad - Cout), constant_values=1.0)
    beta_p = jnp.pad(beta.astype(jnp.float32), (0, Cpad - Cout))
    scale = (gamma_p * inv).reshape(1, Cpad)
    shift = (beta_p - mean * gamma_p * inv).reshape(1, Cpad)

    # ---- Pass 2: conv recompute + BN + ReLU, output emitted directly as (N, Cout, M).
    y = pl.pallas_call(
        functools.partial(_conv_bn_relu_kernel, Cout=Cout, **kern_kw),
        grid=(N, T),
        in_specs=[
            pl.BlockSpec((1, Hp, Wp, Cin), lambda n, t: (n, 0, 0, 0)),
            pl.BlockSpec((K, Cpad), lambda n, t: (0, 0)),
            pl.BlockSpec((1, Cpad), lambda n, t: (0, 0)),
            pl.BlockSpec((1, Cpad), lambda n, t: (0, 0)),
        ],
        out_specs=pl.BlockSpec((1, Cout, tile_m), lambda n, t: (n, 0, t)),
        out_shape=jax.ShapeDtypeStruct((N, Cout, M), jnp.float32),
        compiler_params=pltpu.CompilerParams(
            dimension_semantics=("parallel", "parallel")),
    )(xp, w_flat, scale, shift)

    # Already NCHW-ordered; reshape is metadata-only (no HBM pass).
    return y.reshape(N, Cout, Ho, Wo)


# ----------------- Reference & test -----------------

def _reference(x_nchw, weight_oihw, gamma, beta, *, padding, dilation):
    conv = jax.lax.conv_general_dilated(
        x_nchw, weight_oihw, window_strides=(1, 1),
        padding=((padding, padding), (padding, padding)),
        rhs_dilation=(dilation, dilation),
        dimension_numbers=("NCHW", "OIHW", "NCHW"))
    mean = conv.mean(axis=(0, 2, 3), keepdims=True)
    var = conv.var(axis=(0, 2, 3), keepdims=True)  # biased, like PyTorch training BN
    g = gamma.reshape(1, -1, 1, 1)
    b = beta.reshape(1, -1, 1, 1)
    return jnp.maximum((conv - mean) * jax.lax.rsqrt(var + BN_EPS) * g + b, 0.0)


if __name__ == "__main__":
    # Module config: conv_bn_relu(in_channels=4, out_channels=8, kernel_size=3,
    #                             stride=1, padding=1, dilation=1, bias=False)
    in_channels, out_channels, ksize, padding, dilation = 4, 8, 3, 1, 1
    N, H, W = 2, 16, 16

    key = jax.random.PRNGKey(0)
    kx, kw = jax.random.split(key)

    x = jax.random.normal(kx, (N, in_channels, H, W), dtype=jnp.float32)

    # Deterministic parameter init (shapes per nn.Conv2d / nn.BatchNorm2d).
    fan_in = in_channels * ksize * ksize
    bound = 1.0 / (fan_in ** 0.5)                       # kaiming_uniform(a=sqrt(5)) bound
    weight = jax.random.uniform(kw, (out_channels, in_channels, ksize, ksize),
                                minval=-bound, maxval=bound, dtype=jnp.float32)
    gamma = jnp.ones((out_channels,), jnp.float32)      # BatchNorm2d default weight
    beta = jnp.zeros((out_channels,), jnp.float32)      # BatchNorm2d default bias

    ref = _reference(x, weight, gamma, beta, padding=padding, dilation=dilation)

    # Exact (f32 MXU operand) path, explicit 2-strips-per-image tiling (grid (2, 2)).
    out = conv_bn_relu_forward(x, weight, gamma, beta,
                               stride=1, padding=padding, dilation=dilation,
                               rows_per_tile=8)
    out = jax.block_until_ready(out)
    assert out.shape == (N, out_channels, H, W), out.shape
    assert jnp.allclose(out, ref, atol=1e-4, rtol=1e-4), \
        float(jnp.max(jnp.abs(out - ref)))

    # bf16 MXU-operand path (v6e/v7x fast path), auto tile selection; f32 accumulation
    # keeps the error at the ~1e-2 level expected from bf16 rounding of the operands.
    out_bf16 = conv_bn_relu_forward(x, weight, gamma, beta,
                                    stride=1, padding=padding, dilation=dilation,
                                    matmul_dtype=jnp.bfloat16)
    out_bf16 = jax.block_until_ready(out_bf16)
    assert jnp.allclose(out_bf16, ref, atol=5e-2, rtol=5e-2), \
        float(jnp.max(jnp.abs(out_bf16 - ref)))

    print("KERNEL_OK")
</pallas_src>

<mosaic_0001>
module attributes {stable_mosaic.version = 11 : i64} {
  func.func @_conv_stats_kernel(%arg0: i32, %arg1: i32, %arg2: memref<1x18x18x4xf32, #tpu.memory_space<vmem>>, %arg3: memref<36x128xf32, #tpu.memory_space<vmem>>, %arg4: memref<1x1x1x128xf32, #tpu.memory_space<vmem>>, %arg5: memref<1x1x1x128xf32, #tpu.memory_space<vmem>>) attributes {dimension_semantics = [#tpu.dimension_semantics<parallel>, #tpu.dimension_semantics<parallel>], iteration_bounds = array<i64: 2, 2>, scalar_prefetch = 0 : i64, scratch_operands = 0 : i64, tpu.core_type = #tpu.core_type<tc>, window_params = [{transform_indices = @transform_0, window_bounds = array<i64: 1, 18, 18, 4>}, {pipeline_mode = #tpu.pipeline_mode<synchronous>, transform_indices = @transform_1, window_bounds = array<i64: 36, 128>}, {transform_indices = @transform_2, window_bounds = array<i64: 1, 1, 1, 128>}, {transform_indices = @transform_3, window_bounds = array<i64: 1, 1, 1, 128>}]} {
    %c8_i32 = arith.constant 8 : i32
    %0 = arith.muli %arg1, %c8_i32 : i32
    %1 = tpu.assume_multiple %0, 8 : i32
    %c0 = arith.constant 0 : index
    %2 = arith.index_cast %1 : i32 to index
    %c0_0 = arith.constant 0 : index
    %c0_1 = arith.constant 0 : index
    %3 = vector.load %arg2[%c0, %2, %c0_0, %c0_1] : memref<1x18x18x4xf32, #tpu.memory_space<vmem>>, vector<1x10x18x4xf32>
    %4 = vector.shape_cast %3 : vector<1x10x18x4xf32> to vector<10x18x4xf32>
    %5 = vector.extract_strided_slice %4 {offsets = [0, 0, 0], sizes = [8, 16, 4], strides = [1, 1, 1]} : vector<10x18x4xf32> to vector<8x16x4xf32>
    %6 = vector.extract_strided_slice %4 {offsets = [0, 1, 0], sizes = [8, 16, 4], strides = [1, 1, 1]} : vector<10x18x4xf32> to vector<8x16x4xf32>
    %7 = vector.extract_strided_slice %4 {offsets = [0, 2, 0], sizes = [8, 16, 4], strides = [1, 1, 1]} : vector<10x18x4xf32> to vector<8x16x4xf32>
    %8 = vector.extract_strided_slice %4 {offsets = [1, 0, 0], sizes = [8, 16, 4], strides = [1, 1, 1]} : vector<10x18x4xf32> to vector<8x16x4xf32>
    %9 = vector.extract_strided_slice %4 {offsets = [1, 1, 0], sizes = [8, 16, 4], strides = [1, 1, 1]} : vector<10x18x4xf32> to vector<8x16x4xf32>
    %10 = vector.extract_strided_slice %4 {offsets = [1, 2, 0], sizes = [8, 16, 4], strides = [1, 1, 1]} : vector<10x18x4xf32> to vector<8x16x4xf32>
    %11 = vector.extract_strided_slice %4 {offsets = [2, 0, 0], sizes = [8, 16, 4], strides = [1, 1, 1]} : vector<10x18x4xf32> to vector<8x16x4xf32>
    %12 = vector.extract_strided_slice %4 {offsets = [2, 1, 0], sizes = [8, 16, 4], strides = [1, 1, 1]} : vector<10x18x4xf32> to vector<8x16x4xf32>
    %13 = vector.extract_strided_slice %4 {offsets = [2, 2, 0], sizes = [8, 16, 4], strides = [1, 1, 1]} : vector<10x18x4xf32> to vector<8x16x4xf32>
    %14 = tpu.concatenate %5, %6, %7, %8, %9, %10, %11, %12, %13 in 2 : vector<8x16x4xf32>, vector<8x16x4xf32>, vector<8x16x4xf32>, vector<8x16x4xf32>, vector<8x16x4xf32>, vector<8x16x4xf32>, vector<8x16x4xf32>, vector<8x16x4xf32>, vector<8x16x4xf32> -> vector<8x16x36xf32>
    %15 = vector.shape_cast %14 : vector<8x16x36xf32> to vector<128x36xf32>
    %c0_2 = arith.constant 0 : index
    %c0_3 = arith.constant 0 : index
    %16 = vector.load %arg3[%c0_2, %c0_3] : memref<36x128xf32, #tpu.memory_space<vmem>>, vector<36x128xf32>
    %cst = arith.constant dense<0.000000e+00> : vector<128x128xf32>
    %17 = tpu.matmul %15, %16, %cst {dimension_numbers = #tpu.dot_dimension_numbers<[1], [0], [0], [1], [0, 0, 1, 1], [], []>} : vector<128x36xf32>, vector<36x128xf32>, vector<128x128xf32> -> vector<128x128xf32>
    %cst_4 = arith.constant dense<0.000000e+00> : vector<128xf32>
    %18 = vector.multi_reduction <add>, %17, %cst_4 [0] : vector<128x128xf32> to vector<128xf32>
    %19 = vector.shape_cast %18 : vector<128xf32> to vector<1x1x1x128xf32>
    %c0_5 = arith.constant 0 : index
    %c0_6 = arith.constant 0 : index
    %c0_7 = arith.constant 0 : index
    %c0_8 = arith.constant 0 : index
    %20 = vector.load %arg4[%c0_5, %c0_6, %c0_7, %c0_8] : memref<1x1x1x128xf32, #tpu.memory_space<vmem>>, vector<1x1x1x128xf32>
    tpu.vector_store %arg4[%c0_5, %c0_6, %c0_7, %c0_8], %19 {strides = array<i32>} : memref<1x1x1x128xf32, #tpu.memory_space<vmem>>, vector<1x1x1x128xf32>,
    %21 = arith.mulf %17, %17 : vector<128x128xf32>
    %cst_9 = arith.constant dense<0.000000e+00> : vector<128xf32>
    %22 = vector.multi_reduction <add>, %21, %cst_9 [0] : vector<128x128xf32> to vector<128xf32>
    %23 = vector.shape_cast %22 : vector<128xf32> to vector<1x1x1x128xf32>
    %c0_10 = arith.constant 0 : index
    %c0_11 = arith.constant 0 : index
    %c0_12 = arith.constant 0 : index
    %c0_13 = arith.constant 0 : index
    %24 = vector.load %arg5[%c0_10, %c0_11, %c0_12, %c0_13] : memref<1x1x1x128xf32, #tpu.memory_space<vmem>>, vector<1x1x1x128xf32>
    tpu.vector_store %arg5[%c0_10, %c0_11, %c0_12, %c0_13], %23 {strides = array<i32>} : memref<1x1x1x128xf32, #tpu.memory_space<vmem>>, vector<1x1x1x128xf32>,
    return
  }
  func.func @transform_0(%arg0: i32, %arg1: i32) -> (i32, i32, i32, i32) {
    %c0_i32 = arith.constant 0 : i32
    %c0_i32_0 = arith.constant 0 : i32
    %c0_i32_1 = arith.constant 0 : i32
    %c0_i32_2 = arith.constant 0 : i32
    return %arg0, %c0_i32, %c0_i32_0, %c0_i32_1 : i32, i32, i32, i32
  }
  func.func @transform_1(%arg0: i32, %arg1: i32) -> (i32, i32) {
    %c0_i32 = arith.constant 0 : i32
    %c0_i32_0 = arith.constant 0 : i32
    %c0_i32_1 = arith.constant 0 : i32
    return %c0_i32, %c0_i32_0 : i32, i32
  }
  func.func @transform_2(%arg0: i32, %arg1: i32) -> (i32, i32, i32, i32) {
    %c0_i32 = arith.constant 0 : i32
    %c0_i32_0 = arith.constant 0 : i32
    %c0_i32_1 = arith.constant 0 : i32
    return %arg0, %arg1, %c0_i32, %c0_i32_0 : i32, i32, i32, i32
  }
  func.func @transform_3(%arg0: i32, %arg1: i32) -> (i32, i32, i32, i32) {
    %c0_i32 = arith.constant 0 : i32
    %c0_i32_0 = arith.constant 0 : i32
    %c0_i32_1 = arith.constant 0 : i32
    return %arg0, %arg1, %c0_i32, %c0_i32_0 : i32, i32, i32, i32
  }
}

</mosaic_0001>

<llo_original>
// kernel: tpu_custom_call.1
$region0: #{tpu_custom_call.1}
  #allocation0 [shape = 'u32[]', space=smem, size = 0x4, offset = 0x4, fixed_abs, tag = 'smem constant byte address 0x4 - core index']
  #allocation1 [shape = 'u32[144,128]{1,0:T(1,128)}', space=vmem, size = 0x12000, scoped, tag = 'internal scratch']
  %s0 = inlined_call_operand.vmem [shape: f32[2,18,18,4], index: 0, kind: input, shape index: {}]
  %s1 = inlined_call_operand.vmem [shape: f32[36,128], index: 1, kind: input, shape index: {}]
  %s2 = inlined_call_operand.hbm [shape: f32[2,2,1,128], index: 2, kind: output, shape index: {0}]
  %s3 = inlined_call_operand.hbm [shape: f32[2,2,1,128], index: 3, kind: output, shape index: {1}]
  %4 = xla_tuple %s2, %s3
  %s5 = sld [smem:[#allocation0]]
  $region49: #{tpu_custom_call.1} parent=0
    _
  %s7 = ssub.s32 1, %s5
  %s8 = scalar_select 0, %s7, %s5
  $region1: #{tpu_custom_call.1} parent=0
    #allocation2 [shape = 'u8[1024]{0}', space=vmem, size = 0x400, scoped, tag = 'output window, operand 0']
    #allocation3 [shape = 's32[2]{0}', space=sflag, size = 0x8, scoped, tag = 'scoped memory for tpu_custom_call.1']
    #allocation4 [shape = 'u8[1024]{0}', space=vmem, size = 0x400, scoped, tag = 'output window, operand 1']
    #allocation5 [shape = 's32[2]{0}', space=sflag, size = 0x8, scoped, tag = 'scoped memory for tpu_custom_call.1']
    %9 = vsyncpa [#allocation3], 0
    %s10 = scalar_lea.sflag [#allocation3], 1
    %11 = vsyncpa %s10, 0
    %12 = vsyncpa [#allocation5], 0
    %s13 = scalar_lea.sflag [#allocation5], 1
    %14 = vsyncpa %s13, 0
    loop: start=0, step=1, limit=6
    $region2: #{tpu_custom_call.1} parent=1 // loop_pre_header
      _
    $region3: #{tpu_custom_call.1} parent=1 // loop_header
      %s16 = sphi 0, %s20
      %p17 = scmp.ge.s32.totalorder %s16, 6
      %s23 = sphi 0, %s35
      %s24 = sphi 0, %s31
      %s25 = sphi 0, %s23
      %s26 = sphi 0, %s24
      %s27 = sphi 0, %s25
      %s28 = sphi 0, %s26
      %s38 = sphi 0, %s40
      %s41 = sphi 0, %s38
      %s42 = sphi 0, %s41
      %s58 = sphi 0, %s42
      %s62 = sphi 0, %s62
      %s64 = sphi 0, %s62
      %s65 = sphi 0, %s64
      %s79 = sphi 0, %s65
      %s87 = sphi 0, %s89
      %s90 = sphi 0, %s87
      %s91 = sphi 0, %s90
      %s107 = sphi 0, %s91
      %s115 = sphi 0, %s117
      %s118 = sphi 0, %s115
      %s119 = sphi 0, %s118
      %s135 = sphi 0, %s119
    $region4: #{tpu_custom_call.1} parent=1 // loop_header_branch
      %19 = sbr.rel (%p17) target = $region8
    $region5: #{tpu_custom_call.1} parent=1 // loop_body
      %s21 = ssub.s32 %s16, 1
      %s22 = ssub.s32 %s16, 2
      %s29 = sadd.s32 1, %s24
      %p30 = scmp.ge.s32.totalorder %s29, 2
      %s31 = scalar_select %p30, 0, %s29
      %s32 = sadd.s32 1, %s23
      %s33 = scalar_select %p30, %s32, %s23
      %p34 = scmp.ge.s32.totalorder %s33, 2
      %s35 = scalar_select %p34, 0, %s33
      %s36 = ssub.s32 %s23, %s35
      %p37 = scmp.eq.s32.totalorder %s36, 0
      %s39 = sadd.s32 %s38, 1
      %s40 = scalar_select %p37, %s38, %s39
      %p43 = pneg %p37
      %p44 = scmp.eq.s32.totalorder %s16, 3
      %p45 = por %p43, %p44
      %p46 = scmp.ne.s32.totalorder %s38, %s41
      %p47 = scmp.eq.s32.totalorder %s16, 0
      %p48 = por %p46, %p47
      %p49 = scmp.ne.s32.totalorder %s38, %s41
      %p50 = scmp.eq.s32.totalorder %s21, 3
      %p51 = por %p49, %p50
      %p52 = scmp.ne.s32.totalorder %s41, %s42
      %p53 = scmp.eq.s32.totalorder %s21, 0
      %p54 = por %p52, %p53
      %p55 = scmp.ne.s32.totalorder %s41, %s42
      %p56 = scmp.eq.s32.totalorder %s22, 3
      %p57 = por %p55, %p56
      %p59 = scmp.ne.s32.totalorder %s42, %s58
      %p60 = scmp.eq.s32.totalorder %s22, 0
      %p61 = por %p59, %p60
      %s63 = sadd.s32 %s62, 1
      %p66 = scmp.eq.s32.totalorder %s16, 3
      %p67 = scmp.ne.s32.totalorder %s62, %s64
      %p68 = scmp.eq.s32.totalorder %s16, 0
      %p69 = por %p67, %p68
      %p70 = scmp.ne.s32.totalorder %s62, %s64
      %p71 = scmp.eq.s32.totalorder %s21, 3
      %p72 = por %p70, %p71
      %p73 = scmp.ne.s32.totalorder %s64, %s65
      %p74 = scmp.eq.s32.totalorder %s21, 0
      %p75 = por %p73, %p74
      %p76 = scmp.ne.s32.totalorder %s64, %s65
      %p77 = scmp.eq.s32.totalorder %s22, 3
      %p78 = por %p76, %p77
      %p80 = scmp.ne.s32.totalorder %s65, %s79
      %p81 = scmp.eq.s32.totalorder %s22, 0
      %p82 = por %p80, %p81
      %s83 = ssub.s32 %s23, %s35
      %s84 = ssub.s32 %s24, %s31
      %s85 = sor.u32 %s83, %s84
      %p86 = scmp.eq.s32.totalorder %s85, 0
      %s88 = sadd.s32 %s87, 1
      %s89 = scalar_select %p86, %s87, %s88
      %p92 = pneg %p86
      %p93 = scmp.eq.s32.totalorder %s16, 3
      %p94 = por %p92, %p93
      %p95 = scmp.ne.s32.totalorder %s87, %s90
      %p96 = scmp.eq.s32.totalorder %s16, 0
      %p97 = por %p95, %p96
      %p98 = scmp.ne.s32.totalorder %s87, %s90
      %p99 = scmp.eq.s32.totalorder %s21, 3
      %p100 = por %p98, %p99
      %p101 = scmp.ne.s32.totalorder %s90, %s91
      %p102 = scmp.eq.s32.totalorder %s21, 0
      %p103 = por %p101, %p102
      %p104 = scmp.ne.s32.totalorder %s90, %s91
      %p105 = scmp.eq.s32.totalorder %s22, 3
      %p106 = por %p104, %p105
      %p108 = scmp.ne.s32.totalorder %s91, %s107
      %p109 = scmp.eq.s32.totalorder %s22, 0
      %p110 = por %p108, %p109
      %s111 = ssub.s32 %s23, %s35
      %s112 = ssub.s32 %s24, %s31
      %s113 = sor.u32 %s111, %s112
      %p114 = scmp.eq.s32.totalorder %s113, 0
      %s116 = sadd.s32 %s115, 1
      %s117 = scalar_select %p114, %s115, %s116
      %p120 = pneg %p114
      %p121 = scmp.eq.s32.totalorder %s16, 3
      %p122 = por %p120, %p121
      %p123 = scmp.ne.s32.totalorder %s115, %s118
      %p124 = scmp.eq.s32.totalorder %s16, 0
      %p125 = por %p123, %p124
      %p126 = scmp.ne.s32.totalorder %s115, %s118
      %p127 = scmp.eq.s32.totalorder %s21, 3
      %p128 = por %p126, %p127
      %p129 = scmp.ne.s32.totalorder %s118, %s119
      %p130 = scmp.eq.s32.totalorder %s21, 0
      %p131 = por %p129, %p130
      %p132 = scmp.ne.s32.totalorder %s118, %s119
      %p133 = scmp.eq.s32.totalorder %s22, 3
      %p134 = por %p132, %p133
      %p136 = scmp.ne.s32.totalorder %s119, %s135
      %p137 = scmp.eq.s32.totalorder %s22, 0
      %p138 = por %p136, %p137
      %p139 = scmp.le.s32.totalorder 1, %s16
      %p140 = scmp.lt.s32.totalorder %s16, 5
      %p141 = pnand %p139, %p140
      %p142 = pneg %p141
      // Predicated region
      $region9: #{tpu_custom_call.1} parent=5 // pred_check
        _
      $region10: #{tpu_custom_call.1} parent=5 // pred_check_branch
        %144 = sbr.rel (%p141) target = $region12
      $region11: #{tpu_custom_call.1} parent=5 // pred_region
        %s145 = ssub.s32 %s16, 1
        // Predicated region
        $region13: #{tpu_custom_call.1} parent=11 // pred_check
          %p146 = pneg %p75
        $region14: #{tpu_custom_call.1} parent=11 // pred_check_branch
          %148 = sbr.rel (%p146) target = $region16
        $region15: #{tpu_custom_call.1} parent=11 // pred_region
          _
        $region16: #{tpu_custom_call.1} parent=11 // pred_fallthru
          _
      $region12: #{tpu_custom_call.1} parent=5 // pred_fallthru
        _
      %p149 = scmp.lt.s32.totalorder %s16, 4
      // Predicated region
      $region17: #{tpu_custom_call.1} parent=5 // pred_check
        %p150 = pneg %p149
      $region18: #{tpu_custom_call.1} parent=5 // pred_check_branch
        %152 = sbr.rel (%p150) target = $region20
      $region19: #{tpu_custom_call.1} parent=5 // pred_region
        // Predicated region
        $region21: #{tpu_custom_call.1} parent=19 // pred_check
          %p153 = pneg %p48
        $region22: #{tpu_custom_call.1} parent=19 // pred_check_branch
          %155 = sbr.rel (%p153) target = $region24
        $region23: #{tpu_custom_call.1} parent=19 // pred_region
          %p156 = scmp.lt.s32.totalorder %s23, 1
          %s157 = scalar_select %p156, %s23, 1
          %s158 = smul.addr %s157, 54
          %s159 = smul.addr %s158, 8
          %s160 = scalar_lea.vmem %s0, %s159
        $region24: #{tpu_custom_call.1} parent=19 // pred_fallthru
          _
      $region20: #{tpu_custom_call.1} parent=5 // pred_fallthru
        _
      %p161 = scmp.le.s32.totalorder 1, %s16
      %p162 = scmp.lt.s32.totalorder %s16, 5
      %p163 = pnand %p161, %p162
      %p164 = pneg %p163
      // Predicated region
      $region25: #{tpu_custom_call.1} parent=5 // pred_check
        _
      $region26: #{tpu_custom_call.1} parent=5 // pred_check_branch
        %166 = sbr.rel (%p163) target = $region28
      $region27: #{tpu_custom_call.1} parent=5 // pred_region
        %s167 = ssub.s32 %s16, 1
        %p168 = scmp.lt.s32.totalorder %s25, 1
        %s169 = scalar_select %p168, %s25, 1
        %s170 = smul.addr %s169, 54
        %s171 = smul.addr %s170, 8
        %s172 = scalar_lea.vmem %s0, %s171
        %p173 = pneg %p54
        %p174 = pneg %p51
        %p175 = pneg %p75
        %p176 = pneg %p72
        %p177 = pneg %p103
        %p178 = pneg %p100
        %s179 = sand.u32 %s90, 1
        %s180 = scalar_lea.sflag [#allocation3], %s179
        %s181 = sand.u32 %s90, 1
        %s182 = scalar_lea.vmem [#allocation2], %s181
        %p183 = pneg %p131
        %p184 = pneg %p128
        %s185 = sand.u32 %s118, 1
        %s186 = scalar_lea.sflag [#allocation5], %s185
        %s187 = sand.u32 %s118, 1
        %s188 = scalar_lea.vmem [#allocation4], %s187
        %p189 = scmp.lt.s32.totalorder %s25, 1
        %s190 = scalar_select %p189, %s25, 1
        %s191 = smul.addr %s190, 54
        %s192 = smul.addr %s191, 8
        %s193 = scalar_lea.vmem %s0, %s192
        %s194 = smul.u32 %s26, 8
        %s195 = smul.u32 %s194, 24
        %s196 = scalar_lea.vmem %s193, %s195
        %v197 = vld [vmem:[%s196] sm:$0xff]
        %v198 = vld [vmem:[%s196 + $0x8] sm:$0xff]
        %v199 = vld [vmem:[%s196 + $0x10] sm:$0x3]
        %v200 = vld [vmem:[%s196 + $0x18] sm:$0xff]
        %v201 = vld [vmem:[%s196 + $0x20] sm:$0xff]
        %v202 = vld [vmem:[%s196 + $0x28] sm:$0x3]
        %v203 = vld [vmem:[%s196 + $0x30] sm:$0xff]
        %v204 = vld [vmem:[%s196 + $0x38] sm:$0xff]
        %v205 = vld [vmem:[%s196 + $0x40] sm:$0x3]
        %v206 = vld [vmem:[%s196 + $0x48] sm:$0xff]
        %v207 = vld [vmem:[%s196 + $0x50] sm:$0xff]
        %v208 = vld [vmem:[%s196 + $0x58] sm:$0x3]
        %v209 = vld [vmem:[%s196 + $0x60] sm:$0xff]
        %v210 = vld [vmem:[%s196 + $0x68] sm:$0xff]
        %v211 = vld [vmem:[%s196 + $0x70] sm:$0x3]
        %v212 = vld [vmem:[%s196 + $0x78] sm:$0xff]
        %v213 = vld [vmem:[%s196 + $0x80] sm:$0xff]
        %v214 = vld [vmem:[%s196 + $0x88] sm:$0x3]
        %v215 = vld [vmem:[%s196 + $0x90] sm:$0xff]
        %v216 = vld [vmem:[%s196 + $0x98] sm:$0xff]
        %v217 = vld [vmem:[%s196 + $0xa0] sm:$0x3]
        %v218 = vld [vmem:[%s196 + $0xa8] sm:$0xff]
        %v219 = vld [vmem:[%s196 + $0xb0] sm:$0xff]
        %v220 = vld [vmem:[%s196 + $0xb8] sm:$0x3]
        %v221 = vld [vmem:[%s196 + $0xc0] sm:$0xff]
        %v222 = vld [vmem:[%s196 + $0xc8] sm:$0xff]
        %v223 = vld [vmem:[%s196 + $0xd0] sm:$0x3]
        %v224 = vld [vmem:[%s196 + $0xd8] sm:$0xff]
        %v225 = vld [vmem:[%s196 + $0xe0] sm:$0xff]
        %v226 = vld [vmem:[%s196 + $0xe8] sm:$0x3]
        %vm251 = vcmask 1046528
        %v252 = vrot.slane %v197, 1
        %v253 = vrot.slane %v198, 1
        %v254 = vsel %vm251, %v252, %v253
        %v255 = vrot.slane %v199, 1
        %v256 = vsel %vm251, %v253, %v255
        %v257 = vrot.slane %v200, 1
        %v258 = vrot.slane %v201, 1
        %v259 = vsel %vm251, %v257, %v258
        %v260 = vrot.slane %v202, 1
        %v261 = vsel %vm251, %v258, %v260
        %v262 = vrot.slane %v203, 1
        %v263 = vrot.slane %v204, 1
        %v264 = vsel %vm251, %v262, %v263
        %v265 = vrot.slane %v205, 1
        %v266 = vsel %vm251, %v263, %v265
        %v267 = vrot.slane %v206, 1
        %v268 = vrot.slane %v207, 1
        %v269 = vsel %vm251, %v267, %v268
        %v270 = vrot.slane %v208, 1
        %v271 = vsel %vm251, %v268, %v270
        %v272 = vrot.slane %v209, 1
        %v273 = vrot.slane %v210, 1
        %v274 = vsel %vm251, %v272, %v273
        %v275 = vrot.slane %v211, 1
        %v276 = vsel %vm251, %v273, %v275
        %v277 = vrot.slane %v212, 1
        %v278 = vrot.slane %v213, 1
        %v279 = vsel %vm251, %v277, %v278
        %v280 = vrot.slane %v214, 1
        %v281 = vsel %vm251, %v278, %v280
        %v282 = vrot.slane %v215, 1
        %v283 = vrot.slane %v216, 1
        %v284 = vsel %vm251, %v282, %v283
        %v285 = vrot.slane %v217, 1
        %v286 = vsel %vm251, %v283, %v285
        %v287 = vrot.slane %v218, 1
        %v288 = vrot.slane %v219, 1
        %v289 = vsel %vm251, %v287, %v288
        %v290 = vrot.slane %v220, 1
        %v291 = vsel %vm251, %v288, %v290
        %292 = vrot.lane.b32.xlu0 %v254, 4
        %v293 = vpop.permute.xlu0 %292
        %294 = vrot.lane.b32.xlu0 %v256, 4
        %v295 = vpop.permute.xlu0 %294
        %296 = vrot.lane.b32.xlu0 %v259, 4
        %v297 = vpop.permute.xlu0 %296
        %298 = vrot.lane.b32.xlu0 %v261, 4
        %v299 = vpop.permute.xlu0 %298
        %300 = vrot.lane.b32.xlu0 %v264, 4
        %v301 = vpop.permute.xlu0 %300
        %302 = vrot.lane.b32.xlu0 %v266, 4
        %v303 = vpop.permute.xlu0 %302
        %304 = vrot.lane.b32.xlu0 %v269, 4
        %v305 = vpop.permute.xlu0 %304
        %306 = vrot.lane.b32.xlu0 %v271, 4
        %v307 = vpop.permute.xlu0 %306
        %308 = vrot.lane.b32.xlu0 %v274, 4
        %v309 = vpop.permute.xlu0 %308
        %310 = vrot.lane.b32.xlu0 %v276, 4
        %v311 = vpop.permute.xlu0 %310
        %312 = vrot.lane.b32.xlu0 %v279, 4
        %v313 = vpop.permute.xlu0 %312
        %314 = vrot.lane.b32.xlu0 %v281, 4
        %v315 = vpop.permute.xlu0 %314
        %316 = vrot.lane.b32.xlu0 %v284, 4
        %v317 = vpop.permute.xlu0 %316
        %318 = vrot.lane.b32.xlu0 %v286, 4
        %v319 = vpop.permute.xlu0 %318
        %320 = vrot.lane.b32.xlu0 %v289, 4
        %v321 = vpop.permute.xlu0 %320
        %322 = vrot.lane.b32.xlu0 %v291, 4
        %v323 = vpop.permute.xlu0 %322
        %vm340 = vcmask 1045504
        %v341 = vrot.slane %v197, 2
        %v342 = vrot.slane %v198, 2
        %v343 = vsel %vm340, %v341, %v342
        %v344 = vrot.slane %v199, 2
        %v345 = vsel %vm340, %v342, %v344
        %v346 = vrot.slane %v200, 2
        %v347 = vrot.slane %v201, 2
        %v348 = vsel %vm340, %v346, %v347
        %v349 = vrot.slane %v202, 2
        %v350 = vsel %vm340, %v347, %v349
        %v351 = vrot.slane %v203, 2
        %v352 = vrot.slane %v204, 2
        %v353 = vsel %vm340, %v351, %v352
        %v354 = vrot.slane %v205, 2
        %v355 = vsel %vm340, %v352, %v354
        %v356 = vrot.slane %v206, 2
        %v357 = vrot.slane %v207, 2
        %v358 = vsel %vm340, %v356, %v357
        %v359 = vrot.slane %v208, 2
        %v360 = vsel %vm340, %v357, %v359
        %v361 = vrot.slane %v209, 2
        %v362 = vrot.slane %v210, 2
        %v363 = vsel %vm340, %v361, %v362
        %v364 = vrot.slane %v211, 2
        %v365 = vsel %vm340, %v362, %v364
        %v366 = vrot.slane %v212, 2
        %v367 = vrot.slane %v213, 2
        %v368 = vsel %vm340, %v366, %v367
        %v369 = vrot.slane %v214, 2
        %v370 = vsel %vm340, %v367, %v369
        %v371 = vrot.slane %v215, 2
        %v372 = vrot.slane %v216, 2
        %v373 = vsel %vm340, %v371, %v372
        %v374 = vrot.slane %v217, 2
        %v375 = vsel %vm340, %v372, %v374
        %v376 = vrot.slane %v218, 2
        %v377 = vrot.slane %v219, 2
        %v378 = vsel %vm340, %v376, %v377
        %v379 = vrot.slane %v220, 2
        %v380 = vsel %vm340, %v377, %v379
        %381 = vrot.lane.b32.xlu0 %v343, 8
        %v382 = vpop.permute.xlu0 %381
        %383 = vrot.lane.b32.xlu0 %v345, 8
        %v384 = vpop.permute.xlu0 %383
        %385 = vrot.lane.b32.xlu0 %v348, 8
        %v386 = vpop.permute.xlu0 %385
        %387 = vrot.lane.b32.xlu0 %v350, 8
        %v388 = vpop.permute.xlu0 %387
        %389 = vrot.lane.b32.xlu0 %v353, 8
        %v390 = vpop.permute.xlu0 %389
        %391 = vrot.lane.b32.xlu0 %v355, 8
        %v392 = vpop.permute.xlu0 %391
        %393 = vrot.lane.b32.xlu0 %v358, 8
        %v394 = vpop.permute.xlu0 %393
        %395 = vrot.lane.b32.xlu0 %v360, 8
        %v396 = vpop.permute.xlu0 %395
        %397 = vrot.lane.b32.xlu0 %v363, 8
        %v398 = vpop.permute.xlu0 %397
        %399 = vrot.lane.b32.xlu0 %v365, 8
        %v400 = vpop.permute.xlu0 %399
        %401 = vrot.lane.b32.xlu0 %v368, 8
        %v402 = vpop.permute.xlu0 %401
        %403 = vrot.lane.b32.xlu0 %v370, 8
        %v404 = vpop.permute.xlu0 %403
        %405 = vrot.lane.b32.xlu0 %v373, 8
        %v406 = vpop.permute.xlu0 %405
        %407 = vrot.lane.b32.xlu0 %v375, 8
        %v408 = vpop.permute.xlu0 %407
        %409 = vrot.lane.b32.xlu0 %v378, 8
        %v410 = vpop.permute.xlu0 %409
        %411 = vrot.lane.b32.xlu0 %v380, 8
        %v412 = vpop.permute.xlu0 %411
        %431 = vrot.lane.b32.xlu0 %v200, 12
        %v432 = vpop.permute.xlu0 %431
        %433 = vrot.lane.b32.xlu0 %v201, 12
        %v434 = vpop.permute.xlu0 %433
        %435 = vrot.lane.b32.xlu0 %v203, 12
        %v436 = vpop.permute.xlu0 %435
        %437 = vrot.lane.b32.xlu0 %v204, 12
        %v438 = vpop.permute.xlu0 %437
        %439 = vrot.lane.b32.xlu0 %v206, 12
        %v440 = vpop.permute.xlu0 %439
        %441 = vrot.lane.b32.xlu0 %v207, 12
        %v442 = vpop.permute.xlu0 %441
        %443 = vrot.lane.b32.xlu0 %v209, 12
        %v444 = vpop.permute.xlu0 %443
        %445 = vrot.lane.b32.xlu0 %v210, 12
        %v446 = vpop.permute.xlu0 %445
        %447 = vrot.lane.b32.xlu0 %v212, 12
        %v448 = vpop.permute.xlu0 %447
        %449 = vrot.lane.b32.xlu0 %v213, 12
        %v450 = vpop.permute.xlu0 %449
        %451 = vrot.lane.b32.xlu0 %v215, 12
        %v452 = vpop.permute.xlu0 %451
        %453 = vrot.lane.b32.xlu0 %v216, 12
        %v454 = vpop.permute.xlu0 %453
        %455 = vrot.lane.b32.xlu0 %v218, 12
        %v456 = vpop.permute.xlu0 %455
        %457 = vrot.lane.b32.xlu0 %v219, 12
        %v458 = vpop.permute.xlu0 %457
        %459 = vrot.lane.b32.xlu0 %v221, 12
        %v460 = vpop.permute.xlu0 %459
        %461 = vrot.lane.b32.xlu0 %v222, 12
        %v462 = vpop.permute.xlu0 %461
        %v480 = vrot.slane %v221, 1
        %v481 = vrot.slane %v222, 1
        %v482 = vsel %vm251, %v480, %v481
        %v483 = vrot.slane %v223, 1
        %v484 = vsel %vm251, %v481, %v483
        %485 = vrot.lane.b32.xlu0 %v259, 16
        %v486 = vpop.permute.xlu0 %485
        %487 = vrot.lane.b32.xlu0 %v261, 16
        %v488 = vpop.permute.xlu0 %487
        %489 = vrot.lane.b32.xlu0 %v264, 16
        %v490 = vpop.permute.xlu0 %489
        %491 = vrot.lane.b32.xlu0 %v266, 16
        %v492 = vpop.permute.xlu0 %491
        %493 = vrot.lane.b32.xlu0 %v269, 16
        %v494 = vpop.permute.xlu0 %493
        %495 = vrot.lane.b32.xlu0 %v271, 16
        %v496 = vpop.permute.xlu0 %495
        %497 = vrot.lane.b32.xlu0 %v274, 16
        %v498 = vpop.permute.xlu0 %497
        %499 = vrot.lane.b32.xlu0 %v276, 16
        %v500 = vpop.permute.xlu0 %499
        %501 = vrot.lane.b32.xlu0 %v279, 16
        %v502 = vpop.permute.xlu0 %501
        %503 = vrot.lane.b32.xlu0 %v281, 16
        %v504 = vpop.permute.xlu0 %503
        %505 = vrot.lane.b32.xlu0 %v284, 16
        %v506 = vpop.permute.xlu0 %505
        %507 = vrot.lane.b32.xlu0 %v286, 16
        %v508 = vpop.permute.xlu0 %507
        %509 = vrot.lane.b32.xlu0 %v289, 16
        %v510 = vpop.permute.xlu0 %509
        %511 = vrot.lane.b32.xlu0 %v291, 16
        %v512 = vpop.permute.xlu0 %511
        %513 = vrot.lane.b32.xlu0 %v482, 16
        %v514 = vpop.permute.xlu0 %513
        %515 = vrot.lane.b32.xlu0 %v484, 16
        %v516 = vpop.permute.xlu0 %515
        %v533 = vrot.slane %v221, 2
        %v534 = vrot.slane %v222, 2
        %v535 = vsel %vm340, %v533, %v534
        %v536 = vrot.slane %v223, 2
        %v537 = vsel %vm340, %v534, %v536
        %538 = vrot.lane.b32.xlu0 %v348, 20
        %v539 = vpop.permute.xlu0 %538
        %540 = vrot.lane.b32.xlu0 %v350, 20
        %v541 = vpop.permute.xlu0 %540
        %542 = vrot.lane.b32.xlu0 %v353, 20
        %v543 = vpop.permute.xlu0 %542
        %544 = vrot.lane.b32.xlu0 %v355, 20
        %v545 = vpop.permute.xlu0 %544
        %546 = vrot.lane.b32.xlu0 %v358, 20
        %v547 = vpop.permute.xlu0 %546
        %548 = vrot.lane.b32.xlu0 %v360, 20
        %v549 = vpop.permute.xlu0 %548
        %550 = vrot.lane.b32.xlu0 %v363, 20
        %v551 = vpop.permute.xlu0 %550
        %552 = vrot.lane.b32.xlu0 %v365, 20
        %v553 = vpop.permute.xlu0 %552
        %554 = vrot.lane.b32.xlu0 %v368, 20
        %v555 = vpop.permute.xlu0 %554
        %556 = vrot.lane.b32.xlu0 %v370, 20
        %v557 = vpop.permute.xlu0 %556
        %558 = vrot.lane.b32.xlu0 %v373, 20
        %v559 = vpop.permute.xlu0 %558
        %560 = vrot.lane.b32.xlu0 %v375, 20
        %v561 = vpop.permute.xlu0 %560
        %562 = vrot.lane.b32.xlu0 %v378, 20
        %v563 = vpop.permute.xlu0 %562
        %564 = vrot.lane.b32.xlu0 %v380, 20
        %v565 = vpop.permute.xlu0 %564
        %566 = vrot.lane.b32.xlu0 %v535, 20
        %v567 = vpop.permute.xlu0 %566
        %568 = vrot.lane.b32.xlu0 %v537, 20
        %v569 = vpop.permute.xlu0 %568
        %588 = vrot.lane.b32.xlu0 %v203, 24
        %v589 = vpop.permute.xlu0 %588
        %590 = vrot.lane.b32.xlu0 %v204, 24
        %v591 = vpop.permute.xlu0 %590
        %592 = vrot.lane.b32.xlu0 %v206, 24
        %v593 = vpop.permute.xlu0 %592
        %594 = vrot.lane.b32.xlu0 %v207, 24
        %v595 = vpop.permute.xlu0 %594
        %596 = vrot.lane.b32.xlu0 %v209, 24
        %v597 = vpop.permute.xlu0 %596
        %598 = vrot.lane.b32.xlu0 %v210, 24
        %v599 = vpop.permute.xlu0 %598
        %600 = vrot.lane.b32.xlu0 %v212, 24
        %v601 = vpop.permute.xlu0 %600
        %602 = vrot.lane.b32.xlu0 %v213, 24
        %v603 = vpop.permute.xlu0 %602
        %604 = vrot.lane.b32.xlu0 %v215, 24
        %v605 = vpop.permute.xlu0 %604
        %606 = vrot.lane.b32.xlu0 %v216, 24
        %v607 = vpop.permute.xlu0 %606
        %608 = vrot.lane.b32.xlu0 %v218, 24
        %v609 = vpop.permute.xlu0 %608
        %610 = vrot.lane.b32.xlu0 %v219, 24
        %v611 = vpop.permute.xlu0 %610
        %612 = vrot.lane.b32.xlu0 %v221, 24
        %v613 = vpop.permute.xlu0 %612
        %614 = vrot.lane.b32.xlu0 %v222, 24
        %v615 = vpop.permute.xlu0 %614
        %616 = vrot.lane.b32.xlu0 %v224, 24
        %v617 = vpop.permute.xlu0 %616
        %618 = vrot.lane.b32.xlu0 %v225, 24
        %v619 = vpop.permute.xlu0 %618
        %v637 = vrot.slane %v224, 1
        %v638 = vrot.slane %v225, 1
        %v639 = vsel %vm251, %v637, %v638
        %v640 = vrot.slane %v226, 1
        %v641 = vsel %vm251, %v638, %v640
        %642 = vrot.lane.b32.xlu0 %v264, 28
        %v643 = vpop.permute.xlu0 %642
        %644 = vrot.lane.b32.xlu0 %v266, 28
        %v645 = vpop.permute.xlu0 %644
        %646 = vrot.lane.b32.xlu0 %v269, 28
        %v647 = vpop.permute.xlu0 %646
        %648 = vrot.lane.b32.xlu0 %v271, 28
        %v649 = vpop.permute.xlu0 %648
        %650 = vrot.lane.b32.xlu0 %v274, 28
        %v651 = vpop.permute.xlu0 %650
        %652 = vrot.lane.b32.xlu0 %v276, 28
        %v653 = vpop.permute.xlu0 %652
        %654 = vrot.lane.b32.xlu0 %v279, 28
        %v655 = vpop.permute.xlu0 %654
        %656 = vrot.lane.b32.xlu0 %v281, 28
        %v657 = vpop.permute.xlu0 %656
        %658 = vrot.lane.b32.xlu0 %v284, 28
        %v659 = vpop.permute.xlu0 %658
        %660 = vrot.lane.b32.xlu0 %v286, 28
        %v661 = vpop.permute.xlu0 %660
        %662 = vrot.lane.b32.xlu0 %v289, 28
        %v663 = vpop.permute.xlu0 %662
        %664 = vrot.lane.b32.xlu0 %v291, 28
        %v665 = vpop.permute.xlu0 %664
        %666 = vrot.lane.b32.xlu0 %v482, 28
        %v667 = vpop.permute.xlu0 %666
        %668 = vrot.lane.b32.xlu0 %v484, 28
        %v669 = vpop.permute.xlu0 %668
        %670 = vrot.lane.b32.xlu0 %v639, 28
        %v671 = vpop.permute.xlu0 %670
        %672 = vrot.lane.b32.xlu0 %v641, 28
        %v673 = vpop.permute.xlu0 %672
        %v690 = vrot.slane %v224, 2
        %v691 = vrot.slane %v225, 2
        %v692 = vsel %vm340, %v690, %v691
        %v693 = vrot.slane %v226, 2
        %v694 = vsel %vm340, %v691, %v693
        %695 = vrot.lane.b32.xlu0 %v353, 32
        %v696 = vpop.permute.xlu0 %695
        %697 = vrot.lane.b32.xlu0 %v355, 32
        %v698 = vpop.permute.xlu0 %697
        %699 = vrot.lane.b32.xlu0 %v358, 32
        %v700 = vpop.permute.xlu0 %699
        %701 = vrot.lane.b32.xlu0 %v360, 32
        %v702 = vpop.permute.xlu0 %701
        %703 = vrot.lane.b32.xlu0 %v363, 32
        %v704 = vpop.permute.xlu0 %703
        %705 = vrot.lane.b32.xlu0 %v365, 32
        %v706 = vpop.permute.xlu0 %705
        %707 = vrot.lane.b32.xlu0 %v368, 32
        %v708 = vpop.permute.xlu0 %707
        %709 = vrot.lane.b32.xlu0 %v370, 32
        %v710 = vpop.permute.xlu0 %709
        %711 = vrot.lane.b32.xlu0 %v373, 32
        %v712 = vpop.permute.xlu0 %711
        %713 = vrot.lane.b32.xlu0 %v375, 32
        %v714 = vpop.permute.xlu0 %713
        %715 = vrot.lane.b32.xlu0 %v378, 32
        %v716 = vpop.permute.xlu0 %715
        %717 = vrot.lane.b32.xlu0 %v380, 32
        %v718 = vpop.permute.xlu0 %717
        %719 = vrot.lane.b32.xlu0 %v535, 32
        %v720 = vpop.permute.xlu0 %719
        %721 = vrot.lane.b32.xlu0 %v537, 32
        %v722 = vpop.permute.xlu0 %721
        %723 = vrot.lane.b32.xlu0 %v692, 32
        %v724 = vpop.permute.xlu0 %723
        %725 = vrot.lane.b32.xlu0 %v694, 32
        %v726 = vpop.permute.xlu0 %725
        %vm743 = vcmask 31744
        %v744 = vsel %vm743, %v197, %v293
        %v745 = vsel %vm743, %v198, %v295
        %v746 = vsel %vm743, %v200, %v297
        %v747 = vsel %vm743, %v201, %v299
        %v748 = vsel %vm743, %v203, %v301
        %v749 = vsel %vm743, %v204, %v303
        %v750 = vsel %vm743, %v206, %v305
        %v751 = vsel %vm743, %v207, %v307
        %v752 = vsel %vm743, %v209, %v309
        %v753 = vsel %vm743, %v210, %v311
        %v754 = vsel %vm743, %v212, %v313
        %v755 = vsel %vm743, %v213, %v315
        %v756 = vsel %vm743, %v215, %v317
        %v757 = vsel %vm743, %v216, %v319
        %v758 = vsel %vm743, %v218, %v321
        %v759 = vsel %vm743, %v219, %v323
        %vm760 = vcmask 64512
        %v761 = vsel %vm760, %v744, %v382
        %v762 = vsel %vm760, %v745, %v384
        %v763 = vsel %vm760, %v746, %v386
        %v764 = vsel %vm760, %v747, %v388
        %v765 = vsel %vm760, %v748, %v390
        %v766 = vsel %vm760, %v749, %v392
        %v767 = vsel %vm760, %v750, %v394
        %v768 = vsel %vm760, %v751, %v396
        %v769 = vsel %vm760, %v752, %v398
        %v770 = vsel %vm760, %v753, %v400
        %v771 = vsel %vm760, %v754, %v402
        %v772 = vsel %vm760, %v755, %v404
        %v773 = vsel %vm760, %v756, %v406
        %v774 = vsel %vm760, %v757, %v408
        %v775 = vsel %vm760, %v758, %v410
        %v776 = vsel %vm760, %v759, %v412
        %vm777 = vcmask 97280
        %v778 = vsel %vm777, %v761, %v432
        %v779 = vsel %vm777, %v762, %v434
        %v780 = vsel %vm777, %v763, %v436
        %v781 = vsel %vm777, %v764, %v438
        %v782 = vsel %vm777, %v765, %v440
        %v783 = vsel %vm777, %v766, %v442
        %v784 = vsel %vm777, %v767, %v444
        %v785 = vsel %vm777, %v768, %v446
        %v786 = vsel %vm777, %v769, %v448
        %v787 = vsel %vm777, %v770, %v450
        %v788 = vsel %vm777, %v771, %v452
        %v789 = vsel %vm777, %v772, %v454
        %v790 = vsel %vm777, %v773, %v456
        %v791 = vsel %vm777, %v774, %v458
        %v792 = vsel %vm777, %v775, %v460
        %v793 = vsel %vm777, %v776, %v462
        %vm794 = vcmask 130048
        %v795 = vsel %vm794, %v778, %v486
        %v796 = vsel %vm794, %v779, %v488
        %v797 = vsel %vm794, %v780, %v490
        %v798 = vsel %vm794, %v781, %v492
        %v799 = vsel %vm794, %v782, %v494
        %v800 = vsel %vm794, %v783, %v496
        %v801 = vsel %vm794, %v784, %v498
        %v802 = vsel %vm794, %v785, %v500
        %v803 = vsel %vm794, %v786, %v502
        %v804 = vsel %vm794, %v787, %v504
        %v805 = vsel %vm794, %v788, %v506
        %v806 = vsel %vm794, %v789, %v508
        %v807 = vsel %vm794, %v790, %v510
        %v808 = vsel %vm794, %v791, %v512
        %v809 = vsel %vm794, %v792, %v514
        %v810 = vsel %vm794, %v793, %v516
        %vm811 = vcmask 162816
        %v812 = vsel %vm811, %v795, %v539
        %v813 = vsel %vm811, %v796, %v541
        %v814 = vsel %vm811, %v797, %v543
        %v815 = vsel %vm811, %v798, %v545
        %v816 = vsel %vm811, %v799, %v547
        %v817 = vsel %vm811, %v800, %v549
        %v818 = vsel %vm811, %v801, %v551
        %v819 = vsel %vm811, %v802, %v553
        %v820 = vsel %vm811, %v803, %v555
        %v821 = vsel %vm811, %v804, %v557
        %v822 = vsel %vm811, %v805, %v559
        %v823 = vsel %vm811, %v806, %v561
        %v824 = vsel %vm811, %v807, %v563
        %v825 = vsel %vm811, %v808, %v565
        %v826 = vsel %vm811, %v809, %v567
        %v827 = vsel %vm811, %v810, %v569
        %vm828 = vcmask 195584
        %v829 = vsel %vm828, %v812, %v589
        %v830 = vsel %vm828, %v813, %v591
        %v831 = vsel %vm828, %v814, %v593
        %v832 = vsel %vm828, %v815, %v595
        %v833 = vsel %vm828, %v816, %v597
        %v834 = vsel %vm828, %v817, %v599
        %v835 = vsel %vm828, %v818, %v601
        %v836 = vsel %vm828, %v819, %v603
        %v837 = vsel %vm828, %v820, %v605
        %v838 = vsel %vm828, %v821, %v607
        %v839 = vsel %vm828, %v822, %v609
        %v840 = vsel %vm828, %v823, %v611
        %v841 = vsel %vm828, %v824, %v613
        %v842 = vsel %vm828, %v825, %v615
        %v843 = vsel %vm828, %v826, %v617
        %v844 = vsel %vm828, %v827, %v619
        %vm845 = vcmask 228352
        %v846 = vsel %vm845, %v829, %v643
        %v847 = vsel %vm845, %v830, %v645
        %v848 = vsel %vm845, %v831, %v647
        %v849 = vsel %vm845, %v832, %v649
        %v850 = vsel %vm845, %v833, %v651
        %v851 = vsel %vm845, %v834, %v653
        %v852 = vsel %vm845, %v835, %v655
        %v853 = vsel %vm845, %v836, %v657
        %v854 = vsel %vm845, %v837, %v659
        %v855 = vsel %vm845, %v838, %v661
        %v856 = vsel %vm845, %v839, %v663
        %v857 = vsel %vm845, %v840, %v665
        %v858 = vsel %vm845, %v841, %v667
        %v859 = vsel %vm845, %v842, %v669
        %v860 = vsel %vm845, %v843, %v671
        %v861 = vsel %vm845, %v844, %v673
        %vm862 = vcmask 261120
        %v863 = vsel %vm862, %v846, %v696
        %v864 = vsel %vm862, %v847, %v698
        %v865 = vsel %vm862, %v848, %v700
        %v866 = vsel %vm862, %v849, %v702
        %v867 = vsel %vm862, %v850, %v704
        %v868 = vsel %vm862, %v851, %v706
        %v869 = vsel %vm862, %v852, %v708
        %v870 = vsel %vm862, %v853, %v710
        %v871 = vsel %vm862, %v854, %v712
        %v872 = vsel %vm862, %v855, %v714
        %v873 = vsel %vm862, %v856, %v716
        %v874 = vsel %vm862, %v857, %v718
        %v875 = vsel %vm862, %v858, %v720
        %v876 = vsel %vm862, %v859, %v722
        %v877 = vsel %vm862, %v860, %v724
        %v878 = vsel %vm862, %v861, %v726
        %v879 = vld [vmem:[%s1] sm:$0xff]
        %v880 = vld [vmem:[%s1 + $0x8] sm:$0xff]
        %v881 = vld [vmem:[%s1 + $0x10] sm:$0xff]
        %v882 = vld [vmem:[%s1 + $0x18] sm:$0xff]
        %v883 = vld [vmem:[%s1 + $0x20] sm:$0xf]
        %vm884 = vcmask 293888
        %v886 = vsel %vm884, %v863, 0
        %v889 = vsel %vm884, %v864, 0
        %v892 = vsel %vm884, %v865, 0
        %v895 = vsel %vm884, %v866, 0
        %v898 = vsel %vm884, %v867, 0
        %v901 = vsel %vm884, %v868, 0
        %v904 = vsel %vm884, %v869, 0
        %v907 = vsel %vm884, %v870, 0
        %v910 = vsel %vm884, %v871, 0
        %v913 = vsel %vm884, %v872, 0
        %v916 = vsel %vm884, %v873, 0
        %v919 = vsel %vm884, %v874, 0
        %v922 = vsel %vm884, %v875, 0
        %v925 = vsel %vm884, %v876, 0
        %v928 = vsel %vm884, %v877, 0
        %v931 = vsel %vm884, %v878, 0
        %vm933 = vcmask 1043456
        %v935 = vsel %vm933, %v883, 0
        %937 = vmatprep.subr.mxu0 0.0
        %938 = vmatpush1.msra.mxu0 %v879
        %939 = vmatprep.subr.mxu0 0.0
        %940 = vmatpush1.msra.mxu0 %v880
        %941 = vmatprep.subr.mxu0 0.0
        %942 = vmatpush1.msra.mxu0 %v881
        %943 = vmatprep.subr.mxu0 0.0
        %944 = vmatpush1.msra.mxu0 %v882
        %945 = vmatprep.subr.mxu0 0.0
        %946 = vmatpush1.msra.mxu0 %v935
        %947 = vmatprep.subr.mxu0 0.0
        %948 = vmatpush1.msra.mxu0 0.0
        %949 = vmatprep.subr.mxu0 0.0
        %950 = vmatpush1.msra.mxu0 0.0
        %951 = vmatprep.subr.mxu0 0.0
        %952 = vmatpush1.msra.mxu0 0.0
        %953 = vmatprep.subr.mxu0 0.0
        %954 = vmatpush1.msra.mxu0 0.0
        %955 = vmatprep.subr.mxu0 0.0
        %956 = vmatpush1.msra.mxu0 0.0
        %957 = vmatprep.subr.mxu0 0.0
        %958 = vmatpush1.msra.mxu0 0.0
        %959 = vmatprep.subr.mxu0 0.0
        %960 = vmatpush1.msra.mxu0 0.0
        %961 = vmatprep.subr.mxu0 0.0
        %962 = vmatpush1.msra.mxu0 0.0
        %963 = vmatprep.subr.mxu0 0.0
        %964 = vmatpush1.msra.mxu0 0.0
        %965 = vmatprep.subr.mxu0 0.0
        %966 = vmatpush1.msra.mxu0 0.0
        %967 = vmatprep.subr.mxu0 0.0
        %968 = vmatpush1.msra.mxu0 0.0
        %969 = vmatprep.subr.mxu0 0.0
        %970 = vmatpush1.msra.mxu0 0.0
        %971 = vmatprep.subr.mxu0 0.0
        %972 = vmatpush1.msra.mxu0 0.0
        %973 = vmatprep.subr.mxu0 0.0
        %974 = vmatpush1.msra.mxu0 0.0
        %975 = vmatprep.subr.mxu0 0.0
        %976 = vmatpush1.msra.mxu0 0.0
        %977 = vmatprep.subr.mxu0 0.0
        %978 = vmatpush1.msra.mxu0 0.0
        %979 = vmatprep.subr.mxu0 0.0
        %980 = vmatpush1.msra.mxu0 0.0
        %981 = vmatprep.subr.mxu0 0.0
        %982 = vmatpush1.msra.mxu0 0.0
        %983 = vmatprep.subr.mxu0 0.0
        %984 = vmatpush1.msra.mxu0 0.0
        %985 = vmatprep.subr.mxu0 0.0
        %986 = vmatpush1.msra.mxu0 0.0
        %987 = vmatprep.subr.mxu0 0.0
        %988 = vmatpush1.msra.mxu0 0.0
        %989 = vmatprep.subr.mxu0 0.0
        %990 = vmatpush1.msra.mxu0 0.0
        %991 = vmatprep.subr.mxu0 0.0
        %992 = vmatpush1.msra.mxu0 0.0
        %993 = vmatprep.subr.mxu0 0.0
        %994 = vmatpush1.msra.mxu0 0.0
        %995 = vmatprep.subr.mxu0 0.0
        %996 = vmatpush1.msra.mxu0 0.0
        %997 = vmatprep.subr.mxu0 0.0
        %998 = vmatpush1.msra.mxu0 0.0
        %999 = vmatprep.subr.mxu0 0.0
        %1000 = vmatpush1.msra.mxu0 0.0
        %1001 = vmatprep.mubr.f32.mxu0 0.0
        %1002 = vmatmul.mubr.f32.gmra.mrb[0].mxu0 %v886
        %v1003 = vpop.f32.mrb[0].mxu0
        %v1004 = vadd.f32 0.0, %v1003
        %v1005 = vpop.f32.mrb[0].mxu0
        %1006 = vmatprep.mubr.f32.mxu0 0.0
        %1007 = vmatmul.mubr.f32.gmra.mrb[0].mxu0 %v889
        %v1008 = vpop.f32.mrb[0].mxu0
        %v1009 = vadd.f32 0.0, %v1008
        %v1010 = vpop.f32.mrb[0].mxu0
        %1011 = vmatprep.mubr.f32.mxu0 0.0
        %1012 = vmatmul.mubr.f32.gmra.mrb[0].mxu0 %v892
        %v1013 = vpop.f32.mrb[0].mxu0
        %v1014 = vadd.f32 0.0, %v1013
        %v1015 = vpop.f32.mrb[0].mxu0
        %1016 = vmatprep.mubr.f32.mxu0 0.0
        %1017 = vmatmul.mubr.f32.gmra.mrb[0].mxu0 %v895
        %v1018 = vpop.f32.mrb[0].mxu0
        %v1019 = vadd.f32 0.0, %v1018
        %v1020 = vpop.f32.mrb[0].mxu0
        %1021 = vmatprep.mubr.f32.mxu0 0.0
        %1022 = vmatmul.mubr.f32.gmra.mrb[0].mxu0 %v898
        %v1023 = vpop.f32.mrb[0].mxu0
        %v1024 = vadd.f32 0.0, %v1023
        %v1025 = vpop.f32.mrb[0].mxu0
        %1026 = vmatprep.mubr.f32.mxu0 0.0
        %1027 = vmatmul.mubr.f32.gmra.mrb[0].mxu0 %v901
        %v1028 = vpop.f32.mrb[0].mxu0
        %v1029 = vadd.f32 0.0, %v1028
        %v1030 = vpop.f32.mrb[0].mxu0
        %1031 = vmatprep.mubr.f32.mxu0 0.0
        %1032 = vmatmul.mubr.f32.gmra.mrb[0].mxu0 %v904
        %v1033 = vpop.f32.mrb[0].mxu0
        %v1034 = vadd.f32 0.0, %v1033
        %v1035 = vpop.f32.mrb[0].mxu0
        %1036 = vmatprep.mubr.f32.mxu0 0.0
        %1037 = vmatmul.mubr.f32.gmra.mrb[0].mxu0 %v907
        %v1038 = vpop.f32.mrb[0].mxu0
        %v1039 = vadd.f32 0.0, %v1038
        %v1040 = vpop.f32.mrb[0].mxu0
        %1041 = vmatprep.mubr.f32.mxu0 0.0
        %1042 = vmatmul.mubr.f32.gmra.mrb[0].mxu0 %v910
        %v1043 = vpop.f32.mrb[0].mxu0
        %v1044 = vadd.f32 0.0, %v1043
        %v1045 = vpop.f32.mrb[0].mxu0
        %1046 = vmatprep.mubr.f32.mxu0 0.0
        %1047 = vmatmul.mubr.f32.gmra.mrb[0].mxu0 %v913
        %v1048 = vpop.f32.mrb[0].mxu0
        %v1049 = vadd.f32 0.0, %v1048
        %v1050 = vpop.f32.mrb[0].mxu0
        %1051 = vmatprep.mubr.f32.mxu0 0.0
        %1052 = vmatmul.mubr.f32.gmra.mrb[0].mxu0 %v916
        %v1053 = vpop.f32.mrb[0].mxu0
        %v1054 = vadd.f32 0.0, %v1053
        %v1055 = vpop.f32.mrb[0].mxu0
        %1056 = vmatprep.mubr.f32.mxu0 0.0
        %1057 = vmatmul.mubr.f32.gmra.mrb[0].mxu0 %v919
        %v1058 = vpop.f32.mrb[0].mxu0
        %v1059 = vadd.f32 0.0, %v1058
        %v1060 = vpop.f32.mrb[0].mxu0
        %1061 = vmatprep.mubr.f32.mxu0 0.0
        %1062 = vmatmul.mubr.f32.gmra.mrb[0].mxu0 %v922
        %v1063 = vpop.f32.mrb[0].mxu0
        %v1064 = vadd.f32 0.0, %v1063
        %v1065 = vpop.f32.mrb[0].mxu0
        %1066 = vmatprep.mubr.f32.mxu0 0.0
        %1067 = vmatmul.mubr.f32.gmra.mrb[0].mxu0 %v925
        %v1068 = vpop.f32.mrb[0].mxu0
        %v1069 = vadd.f32 0.0, %v1068
        %v1070 = vpop.f32.mrb[0].mxu0
        %1071 = vmatprep.mubr.f32.mxu0 0.0
        %1072 = vmatmul.mubr.f32.gmra.mrb[0].mxu0 %v928
        %v1073 = vpop.f32.mrb[0].mxu0
        %v1074 = vadd.f32 0.0, %v1073
        %v1075 = vpop.f32.mrb[0].mxu0
        %1076 = vmatprep.mubr.f32.mxu0 0.0
        %1077 = vmatmul.mubr.f32.gmra.mrb[0].mxu0 %v931
        %v1078 = vpop.f32.mrb[0].mxu0
        %v1079 = vadd.f32 0.0, %v1078
        %v1080 = vpop.f32.mrb[0].mxu0
        %1081 = vdwg.mxu0
        %v1082 = vadd.f32 %v1004, %v1009
        %v1083 = vadd.f32 %v1082, %v1014
        %v1084 = vadd.f32 %v1083, %v1019
        %v1085 = vadd.f32 %v1084, %v1024
        %v1086 = vadd.f32 %v1085, %v1029
        %v1087 = vadd.f32 %v1086, %v1034
        %v1088 = vadd.f32 %v1087, %v1039
        %v1089 = vadd.f32 %v1088, %v1044
        %v1090 = vadd.f32 %v1089, %v1049
        %v1091 = vadd.f32 %v1090, %v1054
        %v1092 = vadd.f32 %v1091, %v1059
        %v1093 = vadd.f32 %v1092, %v1064
        %v1094 = vadd.f32 %v1093, %v1069
        %v1095 = vadd.f32 %v1094, %v1074
        %v1096 = vadd.f32 %v1095, %v1079
        %v1097 = vrot.slane %v1096, 4
        %v1098 = vadd.f32 %v1096, %v1097
        %v1099 = vrot.slane %v1098, 2
        %v1100 = vadd.f32 %v1098, %v1099
        %v1101 = vrot.slane %v1100, 1
        %v1102 = vadd.f32 %v1100, %v1101
        %1103 = vst [vmem:[%s182] sm:$0x1] %v1102
        %v1104 = vmul.f32 %v1004, %v1004
        %v1105 = vmul.f32 %v1009, %v1009
        %v1106 = vmul.f32 %v1014, %v1014
        %v1107 = vmul.f32 %v1019, %v1019
        %v1108 = vmul.f32 %v1024, %v1024
        %v1109 = vmul.f32 %v1029, %v1029
        %v1110 = vmul.f32 %v1034, %v1034
        %v1111 = vmul.f32 %v1039, %v1039
        %v1112 = vmul.f32 %v1044, %v1044
        %v1113 = vmul.f32 %v1049, %v1049
        %v1114 = vmul.f32 %v1054, %v1054
        %v1115 = vmul.f32 %v1059, %v1059
        %v1116 = vmul.f32 %v1064, %v1064
        %v1117 = vmul.f32 %v1069, %v1069
        %v1118 = vmul.f32 %v1074, %v1074
        %v1119 = vmul.f32 %v1079, %v1079
        %v1120 = vadd.f32 %v1104, %v1105
        %v1121 = vadd.f32 %v1120, %v1106
        %v1122 = vadd.f32 %v1121, %v1107
        %v1123 = vadd.f32 %v1122, %v1108
        %v1124 = vadd.f32 %v1123, %v1109
        %v1125 = vadd.f32 %v1124, %v1110
        %v1126 = vadd.f32 %v1125, %v1111
        %v1127 = vadd.f32 %v1126, %v1112
        %v1128 = vadd.f32 %v1127, %v1113
        %v1129 = vadd.f32 %v1128, %v1114
        %v1130 = vadd.f32 %v1129, %v1115
        %v1131 = vadd.f32 %v1130, %v1116
        %v1132 = vadd.f32 %v1131, %v1117
        %v1133 = vadd.f32 %v1132, %v1118
        %v1134 = vadd.f32 %v1133, %v1119
        %v1135 = vrot.slane %v1134, 4
        %v1136 = vadd.f32 %v1134, %v1135
        %v1137 = vrot.slane %v1136, 2
        %v1138 = vadd.f32 %v1136, %v1137
        %v1139 = vrot.slane %v1138, 1
        %v1140 = vadd.f32 %v1138, %v1139
        %1141 = vst [vmem:[%s188] sm:$0x1] %v1140
        %s1142 = sand.u32 %s90, 1
        %s1143 = scalar_lea.sflag [#allocation3], %s1142
        %s1144 = sand.u32 %s90, 1
        %s1145 = scalar_lea.vmem [#allocation2], %s1144
        %s1146 = sand.u32 %s118, 1
        %s1147 = scalar_lea.sflag [#allocation5], %s1146
        %s1148 = sand.u32 %s118, 1
        %s1149 = scalar_lea.vmem [#allocation4], %s1148
        // Predicated region
        $region29: #{tpu_custom_call.1} parent=27 // pred_check
          %p1150 = pneg %p100
        $region30: #{tpu_custom_call.1} parent=27 // pred_check_branch
          %1152 = sbr.rel (%p1150) target = $region32
        $region31: #{tpu_custom_call.1} parent=27 // pred_region
          %s1154 = ssub.s32 16, 16
          %1155 = vsyncadd %s1143, %s1154
          %s1156 = smul.addr %s25, 2
          %s1157 = sadd.s32 %s26, %s1156
          %s1158 = smul.addr %s1157, 16
          %s1159 = scalar_lea.hbm %s2, %s1158
          %s1161 = sshll.u32 %s1145, 4
          %s1162 = int_to_ptr.vmem [resolvable:$true] %s1161
          %1164 = dma.vmem_to_hbm [thread:$0]  %s1162, 16, %s1159, %s1143
        $region32: #{tpu_custom_call.1} parent=27 // pred_fallthru
          _
        // Predicated region
        $region33: #{tpu_custom_call.1} parent=27 // pred_check
          %p1165 = pneg %p128
        $region34: #{tpu_custom_call.1} parent=27 // pred_check_branch
          %1167 = sbr.rel (%p1165) target = $region36
        $region35: #{tpu_custom_call.1} parent=27 // pred_region
          %s1169 = ssub.s32 16, 16
          %1170 = vsyncadd %s1147, %s1169
          %s1171 = smul.addr %s25, 2
          %s1172 = sadd.s32 %s26, %s1171
          %s1173 = smul.addr %s1172, 16
          %s1174 = scalar_lea.hbm %s3, %s1173
          %s1176 = sshll.u32 %s1149, 4
          %s1177 = int_to_ptr.vmem [resolvable:$true] %s1176
          %1179 = dma.vmem_to_hbm [thread:$0]  %s1177, 16, %s1174, %s1147
        $region36: #{tpu_custom_call.1} parent=27 // pred_fallthru
          _
      $region28: #{tpu_custom_call.1} parent=5 // pred_fallthru
        _
      %p1180 = scmp.le.s32.totalorder 2, %s16
      // Predicated region
      $region37: #{tpu_custom_call.1} parent=5 // pred_check
        %p1181 = pneg %p1180
      $region38: #{tpu_custom_call.1} parent=5 // pred_check_branch
        %1183 = sbr.rel (%p1181) target = $region40
      $region39: #{tpu_custom_call.1} parent=5 // pred_region
        %s1184 = ssub.s32 %s16, 2
        // Predicated region
        $region41: #{tpu_custom_call.1} parent=39 // pred_check
          %p1185 = pneg %p106
        $region42: #{tpu_custom_call.1} parent=39 // pred_check_branch
          %1187 = sbr.rel (%p1185) target = $region44
        $region43: #{tpu_custom_call.1} parent=39 // pred_region
          %s1188 = sand.u32 %s91, 1
          %s1189 = scalar_lea.sflag [#allocation3], %s1188
          %s1190 = sand.u32 %s91, 1
          %s1191 = scalar_lea.vmem [#allocation2], %s1190
          %1192 = dma.done %s1189, 16
        $region44: #{tpu_custom_call.1} parent=39 // pred_fallthru
          _
        // Predicated region
        $region45: #{tpu_custom_call.1} parent=39 // pred_check
          %p1193 = pneg %p134
        $region46: #{tpu_custom_call.1} parent=39 // pred_check_branch
          %1195 = sbr.rel (%p1193) target = $region48
        $region47: #{tpu_custom_call.1} parent=39 // pred_region
          %s1196 = sand.u32 %s119, 1
          %s1197 = scalar_lea.sflag [#allocation5], %s1196
          %s1198 = sand.u32 %s119, 1
          %s1199 = scalar_lea.vmem [#allocation4], %s1198
          %1200 = dma.done %s1197, 16
        $region48: #{tpu_custom_call.1} parent=39 // pred_fallthru
          _
      $region40: #{tpu_custom_call.1} parent=5 // pred_fallthru
        _
    $region6: #{tpu_custom_call.1} parent=1 // loop_footer
      %s20 = sadd.s32 1, %s16
    $region7: #{tpu_custom_call.1} parent=1 // loop_footer_branch
      %15 = sbr.rel target = $region3
    $region8: #{tpu_custom_call.1} parent=1 // loop_exit
      _
    %1201 = vsyncpa [#allocation3], 1
    %s1202 = scalar_lea.sflag [#allocation3], 1
    %1203 = vsyncpa %s1202, 1
    %1204 = vsyncpa [#allocation5], 1
    %s1205 = scalar_lea.sflag [#allocation5], 1
    %1206 = vsyncpa %s1205, 1

</llo_original>
